<compile_context>
chip_gen: v7x
topology: tpu7x:2x2x1
jax: 0.10.0
libtpu: 0.0.40
codegen_flags: <defaults>
</compile_context>

<pallas_src>
import functools

import jax
import jax.numpy as jnp
from jax import lax
from jax.experimental import pallas as pl
from jax.experimental.pallas import tpu as pltpu


# ---------------------------------------------------------------------------
# Kernels
# ---------------------------------------------------------------------------
def _decoder_kernel_split(z_ref, wf_ref, bf_ref, wh_ref, bh_ref,
                          mu_ref, ls_ref, *, use_sigmoid: bool, d_out: int):
    """D % 128 == 0 path: two separate lane-dense (tb, D) outputs."""
    # In-kernel cast of z (free VPU op) instead of an extra HBM round-trip.
    z = z_ref[...].astype(wf_ref.dtype)
    h = jnp.dot(z, wf_ref[...], preferred_element_type=jnp.float32)
    h = jnp.maximum(h + bf_ref[...], 0.0)

    # Fused heads: one MXU pass against [Wmu | Wls] -> (tb, 2D) accumulator.
    y = jnp.dot(h.astype(wh_ref.dtype), wh_ref[...],
                preferred_element_type=jnp.float32)
    y = y + bh_ref[...]

    # D is a multiple of 128, so this in-register split is lane-tile aligned.
    mu = y[:, :d_out]
    ls = y[:, d_out:]
    if use_sigmoid:
        mu = jax.nn.sigmoid(mu)   # EUP work only on the mu half.
    mu_ref[...] = mu.astype(mu_ref.dtype)
    ls_ref[...] = ls.astype(ls_ref.dtype)


def _decoder_kernel_fused(z_ref, wf_ref, bf_ref, wh_ref, bh_ref, out_ref,
                          *, use_sigmoid: bool, d_out: int):
    """D % 128 != 0 path: fused (tb, 2D) lane-dense output, split outside."""
    z = z_ref[...].astype(wf_ref.dtype)
    h = jnp.dot(z, wf_ref[...], preferred_element_type=jnp.float32)
    h = jnp.maximum(h + bf_ref[...], 0.0)

    y = jnp.dot(h.astype(wh_ref.dtype), wh_ref[...],
                preferred_element_type=jnp.float32)
    y = y + bh_ref[...]

    if use_sigmoid:
        # Sigmoid only on the mu half via a lane mask; avoids slicing the
        # accumulator at a non-128-aligned lane boundary.
        col = lax.broadcasted_iota(jnp.int32, y.shape, dimension=1)
        y = jnp.where(col < d_out, jax.nn.sigmoid(y), y)

    out_ref[...] = y.astype(out_ref.dtype)


# ---------------------------------------------------------------------------
# One-time parameter prep (do NOT run per forward call)
# ---------------------------------------------------------------------------
def prepare_decoder_params(w_f, b_f, w_mu, b_mu, w_ls, b_ls, *,
                           compute_dtype=jnp.bfloat16):
    """Concat the two heads and cast weights to the MXU dtype, once.

    Args are in (in_features, out_features) layout (transposed vs nn.Linear).
    Biases stay f32; only the MXU operands are cast.
    """
    wf = w_f.astype(compute_dtype)                                   # (Z, H)
    bf = b_f.reshape(1, -1).astype(jnp.float32)                      # (1, H)
    wh = jnp.concatenate([w_mu, w_ls], axis=1).astype(compute_dtype)  # (H, 2D)
    bh = jnp.concatenate([b_mu, b_ls], axis=0).reshape(1, -1)        # (1, 2D)
    bh = bh.astype(jnp.float32)
    return {
        "wf": wf, "bf": bf, "wh": wh, "bh": bh,
        "z_dim": int(w_f.shape[0]),
        "hidden_dim": int(w_f.shape[1]),
        "output_dim": int(w_mu.shape[1]),
    }


def _vmem_limit_bytes():
    """~0.65x of the chip's VMEM (≈40 MiB on v7x, ≈80 MiB on v5e/v6e)."""
    try:
        cap = pltpu.get_tpu_info().vmem_capacity_bytes
        return int(cap * 0.65)
    except Exception:
        return 48 * 1024 * 1024


def _in_specs(Z, H, D2, tb, single_buffer_weights):
    # Weights / biases are resident across the batch grid (constant index_map).
    # Single-buffer them so only one VMEM copy is allocated.
    res_kw = {}
    if single_buffer_weights:
        res_kw = {"pipeline_mode": pl.Buffered(1)}
    return [
        pl.BlockSpec((tb, Z), lambda i: (i, 0)),                 # z, tiled on B
        pl.BlockSpec((Z, H), lambda i: (0, 0), **res_kw),        # W_f
        pl.BlockSpec((1, H), lambda i: (0, 0), **res_kw),        # b_f
        pl.BlockSpec((H, D2), lambda i: (0, 0), **res_kw),       # [W_mu|W_ls]
        pl.BlockSpec((1, D2), lambda i: (0, 0), **res_kw),       # [b_mu|b_ls]
    ]


# ---------------------------------------------------------------------------
# Forward
# ---------------------------------------------------------------------------
def decoder_forward(z, params, *, activation: bool = False, tile_b: int = 512):
    """Pallas Decoder.forward.

    Args:
      z:       (B, Z) latent batch, f32 (cast to the MXU dtype inside the
               kernel).
      params:  output of prepare_decoder_params.
      activation: apply sigmoid to mu_theta (matches the PyTorch flag).
      tile_b:  batch tile size (rows per grid step).

    Returns:
      (mu_theta, log_sigma_squared_theta), each (B, D) f32.
    """
    B, Z = z.shape
    H, D = params["hidden_dim"], params["output_dim"]
    wf, bf, wh, bh = params["wf"], params["bf"], params["wh"], params["bh"]
    D2 = 2 * D
    out_dtype = jnp.float32

    # Batch tile.  When B is not a multiple of tb, the padded rows of the last
    # z block flow through the matmuls/sigmoid and are dropped on the masked
    # writeback -- functionally fine, garbage only lands in dropped rows.
    tb = B if B <= tile_b else tile_b
    # Guarantee >= 2 "parallel" grid steps when B is large enough so both v7x
    # TensorCores get work (one extra ~0.35us step is harmless on 1-TC chips).
    if tb == B and B >= 16 and B % 16 == 0:
        tb = B // 2
    grid = (pl.cdiv(B, tb),)

    split_outputs = (D % 128 == 0)

    itemsize = lambda a: a.dtype.itemsize
    cost = pl.CostEstimate(
        flops=2 * B * (Z * H + H * D2),
        transcendentals=B * D if activation else 0,
        bytes_accessed=(z.size * itemsize(z) + wf.size * itemsize(wf)
                        + wh.size * itemsize(wh) + bf.size * 4 + bh.size * 4
                        + B * D2 * 4),
    )
    cparams = pltpu.CompilerParams(
        dimension_semantics=("parallel",),
        vmem_limit_bytes=_vmem_limit_bytes(),
    )

    if split_outputs:
        kernel = functools.partial(_decoder_kernel_split,
                                   use_sigmoid=activation, d_out=D)
        out_shape = (jax.ShapeDtypeStruct((B, D), out_dtype),
                     jax.ShapeDtypeStruct((B, D), out_dtype))
        out_specs = (pl.BlockSpec((tb, D), lambda i: (i, 0)),
                     pl.BlockSpec((tb, D), lambda i: (i, 0)))
    else:
        kernel = functools.partial(_decoder_kernel_fused,
                                   use_sigmoid=activation, d_out=D)
        out_shape = jax.ShapeDtypeStruct((B, D2), out_dtype)
        out_specs = pl.BlockSpec((tb, D2), lambda i: (i, 0))

    # TODO(synk): add an N-tiling grid axis over 2D for head weights too large
    # for v7x's 64 MiB VMEM (H*2D*2B >~ 24 MiB); not needed at these shapes.

    def _call(single_buffer_weights):
        return pl.pallas_call(
            kernel,
            out_shape=out_shape,
            grid=grid,
            in_specs=_in_specs(Z, H, D2, tb, single_buffer_weights),
            out_specs=out_specs,
            compiler_params=cparams,
            cost_estimate=cost,
        )(z, wf, bf, wh, bh)

    try:
        result = _call(True)
    except Exception:
        # pl.Buffered(1) rejected by this jax/Mosaic build -> default buffering.
        result = _call(False)

    if split_outputs:
        mu, ls = result
        return mu, ls
    y = result
    return y[:, :D], y[:, D:]


# ---------------------------------------------------------------------------
# Init + reference
# ---------------------------------------------------------------------------
def init_decoder_params(key, z_dim, hidden_dim, output_dim, dtype=jnp.float32):
    """nn.Linear-style U(-1/sqrt(fan_in), 1/sqrt(fan_in)) init, (in, out) layout."""
    ks = jax.random.split(key, 6)

    def linear(kw, kb, fan_in, fan_out):
        bound = 1.0 / jnp.sqrt(fan_in)
        w = jax.random.uniform(kw, (fan_in, fan_out), dtype, -bound, bound)
        b = jax.random.uniform(kb, (fan_out,), dtype, -bound, bound)
        return w, b

    w_f, b_f = linear(ks[0], ks[1], z_dim, hidden_dim)
    w_mu, b_mu = linear(ks[2], ks[3], hidden_dim, output_dim)
    w_ls, b_ls = linear(ks[4], ks[5], hidden_dim, output_dim)
    return w_f, b_f, w_mu, b_mu, w_ls, b_ls


def _reference(z, w_f, b_f, w_mu, b_mu, w_ls, b_ls, *, activation=False,
               compute_dtype=jnp.float32):
    """Plain-JAX reference with the same operand-dtype policy as the kernel."""
    zc = z.astype(compute_dtype)
    h = jnp.dot(zc, w_f.astype(compute_dtype),
                preferred_element_type=jnp.float32) + b_f
    h = jnp.maximum(h, 0.0)
    hc = h.astype(compute_dtype)
    mu = jnp.dot(hc, w_mu.astype(compute_dtype),
                 preferred_element_type=jnp.float32) + b_mu
    if activation:
        mu = jax.nn.sigmoid(mu)
    ls = jnp.dot(hc, w_ls.astype(compute_dtype),
                 preferred_element_type=jnp.float32) + b_ls
    return mu, ls


# ---------------------------------------------------------------------------
# Demo / checks
# ---------------------------------------------------------------------------
if __name__ == "__main__":
    key = jax.random.PRNGKey(0)

    # ---- Config 1: D = 64 (fused-output + masked-sigmoid path) ------------
    B, Z, H, D = 8, 16, 32, 64
    kz, kp, kz2, kp2 = jax.random.split(key, 4)
    z = jax.random.normal(kz, (B, Z), jnp.float32)
    raw = init_decoder_params(kp, Z, H, D)

    prep_f32 = prepare_decoder_params(*raw, compute_dtype=jnp.float32)
    prep_bf16 = prepare_decoder_params(*raw, compute_dtype=jnp.bfloat16)

    # f32 path, no activation: tight check.
    mu, ls = decoder_forward(z, prep_f32, activation=False)
    jax.block_until_ready((mu, ls))
    mu_r, ls_r = _reference(z, *raw, activation=False, compute_dtype=jnp.float32)
    assert mu.shape == (B, D) and ls.shape == (B, D)
    assert jnp.allclose(mu, mu_r, atol=1e-5, rtol=1e-5)
    assert jnp.allclose(ls, ls_r, atol=1e-5, rtol=1e-5)

    # f32 path, sigmoid on mu (masked lane select in the kernel).
    mu_a, ls_a = decoder_forward(z, prep_f32, activation=True)
    jax.block_until_ready((mu_a, ls_a))
    mu_ar, ls_ar = _reference(z, *raw, activation=True, compute_dtype=jnp.float32)
    assert jnp.allclose(mu_a, mu_ar, atol=1e-5, rtol=1e-5)
    assert jnp.allclose(ls_a, ls_ar, atol=1e-5, rtol=1e-5)

    # bf16 MXU path (default): loose check vs a bf16-operand reference.
    mu_b, ls_b = decoder_forward(z, prep_bf16, activation=False)
    jax.block_until_ready((mu_b, ls_b))
    mu_br, ls_br = _reference(z, *raw, activation=False, compute_dtype=jnp.bfloat16)
    assert jnp.allclose(mu_b, mu_br, atol=5e-3, rtol=5e-3)
    assert jnp.allclose(ls_b, ls_br, atol=5e-3, rtol=5e-3)

    # ---- Config 2: D = 128 (split lane-dense outputs path) ----------------
    B2, Z2, H2, D2 = 8, 16, 32, 128
    z2 = jax.random.normal(kz2, (B2, Z2), jnp.float32)
    raw2 = init_decoder_params(kp2, Z2, H2, D2)
    prep2 = prepare_decoder_params(*raw2, compute_dtype=jnp.float32)

    mu2, ls2 = decoder_forward(z2, prep2, activation=True)
    jax.block_until_ready((mu2, ls2))
    mu2_r, ls2_r = _reference(z2, *raw2, activation=True,
                              compute_dtype=jnp.float32)
    assert mu2.shape == (B2, D2) and ls2.shape == (B2, D2)
    assert jnp.allclose(mu2, mu2_r, atol=1e-5, rtol=1e-5)
    assert jnp.allclose(ls2, ls2_r, atol=1e-5, rtol=1e-5)

    print("KERNEL_OK")
</pallas_src>

<mosaic_0001>
module attributes {stable_mosaic.version = 11 : i64} {
  func.func @_decoder_kernel_fused(%arg0: i32, %arg1: memref<8x16xf32, #tpu.memory_space<vmem>>, %arg2: memref<16x32xf32, #tpu.memory_space<vmem>>, %arg3: memref<1x32xf32, #tpu.memory_space<vmem>>, %arg4: memref<32x128xf32, #tpu.memory_space<vmem>>, %arg5: memref<1x128xf32, #tpu.memory_space<vmem>>, %arg6: memref<8x128xf32, #tpu.memory_space<vmem>>) attributes {dimension_semantics = [#tpu.dimension_semantics<parallel>], iteration_bounds = array<i64: 1>, scalar_prefetch = 0 : i64, scratch_operands = 0 : i64, tpu.core_type = #tpu.core_type<tc>, window_params = [{transform_indices = @transform_0, window_bounds = array<i64: 8, 16>}, {pipeline_mode = #tpu.pipeline_mode<synchronous>, transform_indices = @transform_1, window_bounds = array<i64: 16, 32>}, {pipeline_mode = #tpu.pipeline_mode<synchronous>, transform_indices = @transform_2, window_bounds = array<i64: 1, 32>}, {pipeline_mode = #tpu.pipeline_mode<synchronous>, transform_indices = @transform_3, window_bounds = array<i64: 32, 128>}, {pipeline_mode = #tpu.pipeline_mode<synchronous>, transform_indices = @transform_4, window_bounds = array<i64: 1, 128>}, {transform_indices = @transform_5, window_bounds = array<i64: 8, 128>}]} {
    %c0 = arith.constant 0 : index
    %c0_0 = arith.constant 0 : index
    %0 = vector.load %arg1[%c0, %c0_0] : memref<8x16xf32, #tpu.memory_space<vmem>>, vector<8x16xf32>
    %c0_1 = arith.constant 0 : index
    %c0_2 = arith.constant 0 : index
    %1 = vector.load %arg2[%c0_1, %c0_2] : memref<16x32xf32, #tpu.memory_space<vmem>>, vector<16x32xf32>
    %cst = arith.constant dense<0.000000e+00> : vector<8x32xf32>
    %2 = tpu.matmul %0, %1, %cst {dimension_numbers = #tpu.dot_dimension_numbers<[1], [0], [0], [1], [0, 0, 1, 1], [], []>} : vector<8x16xf32>, vector<16x32xf32>, vector<8x32xf32> -> vector<8x32xf32>
    %c0_3 = arith.constant 0 : index
    %c0_4 = arith.constant 0 : index
    %3 = vector.load %arg3[%c0_3, %c0_4] : memref<1x32xf32, #tpu.memory_space<vmem>>, vector<1x32xf32>
    %4 = vector.broadcast %3 : vector<1x32xf32> to vector<8x32xf32>
    %5 = arith.addf %2, %4 : vector<8x32xf32>
    %cst_5 = arith.constant 0.000000e+00 : f32
    %6 = vector.broadcast %cst_5 : f32 to vector<8x32xf32>
    %7 = arith.maximumf %5, %6 : vector<8x32xf32>
    %c0_6 = arith.constant 0 : index
    %c0_7 = arith.constant 0 : index
    %8 = vector.load %arg4[%c0_6, %c0_7] : memref<32x128xf32, #tpu.memory_space<vmem>>, vector<32x128xf32>
    %cst_8 = arith.constant dense<0.000000e+00> : vector<8x128xf32>
    %9 = tpu.matmul %7, %8, %cst_8 {dimension_numbers = #tpu.dot_dimension_numbers<[1], [0], [0], [1], [0, 0, 1, 1], [], []>} : vector<8x32xf32>, vector<32x128xf32>, vector<8x128xf32> -> vector<8x128xf32>
    %c0_9 = arith.constant 0 : index
    %c0_10 = arith.constant 0 : index
    %10 = vector.load %arg5[%c0_9, %c0_10] : memref<1x128xf32, #tpu.memory_space<vmem>>, vector<1x128xf32>
    %11 = vector.broadcast %10 : vector<1x128xf32> to vector<8x128xf32>
    %12 = arith.addf %9, %11 : vector<8x128xf32>
    %c0_11 = arith.constant 0 : index
    %c0_12 = arith.constant 0 : index
    %13 = vector.load %arg6[%c0_11, %c0_12] : memref<8x128xf32, #tpu.memory_space<vmem>>, vector<8x128xf32>
    tpu.vector_store %arg6[%c0_11, %c0_12], %12 {strides = array<i32>} : memref<8x128xf32, #tpu.memory_space<vmem>>, vector<8x128xf32>,
    return
  }
  func.func @transform_0(%arg0: i32) -> (i32, i32) {
    %c0_i32 = arith.constant 0 : i32
    %c0_i32_0 = arith.constant 0 : i32
    return %arg0, %c0_i32 : i32, i32
  }
  func.func @transform_1(%arg0: i32) -> (i32, i32) {
    %c0_i32 = arith.constant 0 : i32
    %c0_i32_0 = arith.constant 0 : i32
    %c0_i32_1 = arith.constant 0 : i32
    return %c0_i32, %c0_i32_0 : i32, i32
  }
  func.func @transform_2(%arg0: i32) -> (i32, i32) {
    %c0_i32 = arith.constant 0 : i32
    %c0_i32_0 = arith.constant 0 : i32
    %c0_i32_1 = arith.constant 0 : i32
    return %c0_i32, %c0_i32_0 : i32, i32
  }
  func.func @transform_3(%arg0: i32) -> (i32, i32) {
    %c0_i32 = arith.constant 0 : i32
    %c0_i32_0 = arith.constant 0 : i32
    %c0_i32_1 = arith.constant 0 : i32
    return %c0_i32, %c0_i32_0 : i32, i32
  }
  func.func @transform_4(%arg0: i32) -> (i32, i32) {
    %c0_i32 = arith.constant 0 : i32
    %c0_i32_0 = arith.constant 0 : i32
    %c0_i32_1 = arith.constant 0 : i32
    return %c0_i32, %c0_i32_0 : i32, i32
  }
  func.func @transform_5(%arg0: i32) -> (i32, i32) {
    %c0_i32 = arith.constant 0 : i32
    %c0_i32_0 = arith.constant 0 : i32
    return %arg0, %c0_i32 : i32, i32
  }
}

module attributes {stable_mosaic.version = 11 : i64} {
  func.func @_decoder_kernel_fused(%arg0: i32, %arg1: memref<8x16xf32, #tpu.memory_space<vmem>>, %arg2: memref<16x32xf32, #tpu.memory_space<vmem>>, %arg3: memref<1x32xf32, #tpu.memory_space<vmem>>, %arg4: memref<32x128xf32, #tpu.memory_space<vmem>>, %arg5: memref<1x128xf32, #tpu.memory_space<vmem>>, %arg6: memref<8x128xf32, #tpu.memory_space<vmem>>) attributes {dimension_semantics = [#tpu.dimension_semantics<parallel>], iteration_bounds = array<i64: 1>, scalar_prefetch = 0 : i64, scratch_operands = 0 : i64, tpu.core_type = #tpu.core_type<tc>, window_params = [{transform_indices = @transform_0, window_bounds = array<i64: 8, 16>}, {pipeline_mode = #tpu.pipeline_mode<synchronous>, transform_indices = @transform_1, window_bounds = array<i64: 16, 32>}, {pipeline_mode = #tpu.pipeline_mode<synchronous>, transform_indices = @transform_2, window_bounds = array<i64: 1, 32>}, {pipeline_mode = #tpu.pipeline_mode<synchronous>, transform_indices = @transform_3, window_bounds = array<i64: 32, 128>}, {pipeline_mode = #tpu.pipeline_mode<synchronous>, transform_indices = @transform_4, window_bounds = array<i64: 1, 128>}, {transform_indices = @transform_5, window_bounds = array<i64: 8, 128>}]} {
    %c0 = arith.constant 0 : index
    %c0_0 = arith.constant 0 : index
    %0 = vector.load %arg1[%c0, %c0_0] : memref<8x16xf32, #tpu.memory_space<vmem>>, vector<8x16xf32>
    %c0_1 = arith.constant 0 : index
    %c0_2 = arith.constant 0 : index
    %1 = vector.load %arg2[%c0_1, %c0_2] : memref<16x32xf32, #tpu.memory_space<vmem>>, vector<16x32xf32>
    %cst = arith.constant dense<0.000000e+00> : vector<8x32xf32>
    %2 = tpu.matmul %0, %1, %cst {dimension_numbers = #tpu.dot_dimension_numbers<[1], [0], [0], [1], [0, 0, 1, 1], [], []>} : vector<8x16xf32>, vector<16x32xf32>, vector<8x32xf32> -> vector<8x32xf32>
    %c0_3 = arith.constant 0 : index
    %c0_4 = arith.constant 0 : index
    %3 = vector.load %arg3[%c0_3, %c0_4] : memref<1x32xf32, #tpu.memory_space<vmem>>, vector<1x32xf32>
    %4 = vector.broadcast %3 : vector<1x32xf32> to vector<8x32xf32>
    %5 = arith.addf %2, %4 : vector<8x32xf32>
    %cst_5 = arith.constant 0.000000e+00 : f32
    %6 = vector.broadcast %cst_5 : f32 to vector<8x32xf32>
    %7 = arith.maximumf %5, %6 : vector<8x32xf32>
    %c0_6 = arith.constant 0 : index
    %c0_7 = arith.constant 0 : index
    %8 = vector.load %arg4[%c0_6, %c0_7] : memref<32x128xf32, #tpu.memory_space<vmem>>, vector<32x128xf32>
    %cst_8 = arith.constant dense<0.000000e+00> : vector<8x128xf32>
    %9 = tpu.matmul %7, %8, %cst_8 {dimension_numbers = #tpu.dot_dimension_numbers<[1], [0], [0], [1], [0, 0, 1, 1], [], []>} : vector<8x32xf32>, vector<32x128xf32>, vector<8x128xf32> -> vector<8x128xf32>
    %c0_9 = arith.constant 0 : index
    %c0_10 = arith.constant 0 : index
    %10 = vector.load %arg5[%c0_9, %c0_10] : memref<1x128xf32, #tpu.memory_space<vmem>>, vector<1x128xf32>
    %11 = vector.broadcast %10 : vector<1x128xf32> to vector<8x128xf32>
    %12 = arith.addf %9, %11 : vector<8x128xf32>
    %c0_11 = arith.constant 0 : index
    %c0_12 = arith.constant 0 : index
    %13 = vector.load %arg6[%c0_11, %c0_12] : memref<8x128xf32, #tpu.memory_space<vmem>>, vector<8x128xf32>
    tpu.vector_store %arg6[%c0_11, %c0_12], %12 {strides = array<i32>} : memref<8x128xf32, #tpu.memory_space<vmem>>, vector<8x128xf32>,
    return
  }
  func.func @transform_0(%arg0: i32) -> (i32, i32) {
    %c0_i32 = arith.constant 0 : i32
    %c0_i32_0 = arith.constant 0 : i32
    return %arg0, %c0_i32 : i32, i32
  }
  func.func @transform_1(%arg0: i32) -> (i32, i32) {
    %c0_i32 = arith.constant 0 : i32
    %c0_i32_0 = arith.constant 0 : i32
    %c0_i32_1 = arith.constant 0 : i32
    return %c0_i32, %c0_i32_0 : i32, i32
  }
  func.func @transform_2(%arg0: i32) -> (i32, i32) {
    %c0_i32 = arith.constant 0 : i32
    %c0_i32_0 = arith.constant 0 : i32
    %c0_i32_1 = arith.constant 0 : i32
    return %c0_i32, %c0_i32_0 : i32, i32
  }
  func.func @transform_3(%arg0: i32) -> (i32, i32) {
    %c0_i32 = arith.constant 0 : i32
    %c0_i32_0 = arith.constant 0 : i32
    %c0_i32_1 = arith.constant 0 : i32
    return %c0_i32, %c0_i32_0 : i32, i32
  }
  func.func @transform_4(%arg0: i32) -> (i32, i32) {
    %c0_i32 = arith.constant 0 : i32
    %c0_i32_0 = arith.constant 0 : i32
    %c0_i32_1 = arith.constant 0 : i32
    return %c0_i32, %c0_i32_0 : i32, i32
  }
  func.func @transform_5(%arg0: i32) -> (i32, i32) {
    %c0_i32 = arith.constant 0 : i32
    %c0_i32_0 = arith.constant 0 : i32
    return %arg0, %c0_i32 : i32, i32
  }
}

</mosaic_0001>

<llo_original>
// kernel: tpu_custom_call.1
$region0: #{tpu_custom_call.1}
  #allocation0 [shape = 'u32[]', space=smem, size = 0x4, offset = 0x4, fixed_abs, tag = 'smem constant byte address 0x4 - core index']
  #allocation1 [shape = 'u32[144,128]{1,0:T(1,128)}', space=vmem, size = 0x12000, scoped, tag = 'internal scratch']
  %s0 = inlined_call_operand.hbm [shape: f32[8,16], index: 0, kind: input, shape index: {}]
  %s1 = inlined_call_operand.hbm [shape: f32[16,32], index: 1, kind: input, shape index: {}]
  %s2 = inlined_call_operand.vmem [shape: f32[1,32], index: 2, kind: input, shape index: {}]
  %s3 = inlined_call_operand.hbm [shape: f32[32,128], index: 3, kind: input, shape index: {}]
  %s4 = inlined_call_operand.vmem [shape: f32[1,128], index: 4, kind: input, shape index: {}]
  %s5 = inlined_call_operand.hbm [shape: f32[8,128], index: 5, kind: output, shape index: {}]
  %s6 = sld [smem:[#allocation0]]
  $region42: #{tpu_custom_call.1} parent=0
    _
  %s8 = ssub.s32 1, %s6
  %s9 = scalar_select 0, %s8, %s6
  $region1: #{tpu_custom_call.1} parent=0
    #allocation2 [shape = 'u8[4096]{0}', space=vmem, size = 0x1000, scoped, tag = 'input window, operand 0, single buffered']
    #allocation3 [shape = 's32[1]{0}', space=sflag, size = 0x4, scoped, tag = 'scoped memory for tpu_custom_call.1']
    #allocation4 [shape = 's32[1]{0}', space=sflag, size = 0x4, scoped, tag = 'scoped memory for tpu_custom_call.1']
    #allocation5 [shape = 'u8[8192]{0}', space=vmem, size = 0x2000, scoped, tag = 'input window, operand 1, single buffered']
    #allocation6 [shape = 's32[1]{0}', space=sflag, size = 0x4, scoped, tag = 'scoped memory for tpu_custom_call.1']
    #allocation7 [shape = 'u8[16384]{0}', space=vmem, size = 0x4000, scoped, tag = 'input window, operand 3, single buffered']
    #allocation8 [shape = 'u8[4096]{0}', space=vmem, size = 0x1000, scoped, tag = 'output window, operand 0, single buffered']
    %10 = vsyncpa [#allocation3], 0
    %11 = vsyncpa [#allocation6], 0
    %12 = vsyncpa [#allocation4], 0
    // Predicated region
    $region2: #{tpu_custom_call.1} parent=1 // pred_check
      _
    $region3: #{tpu_custom_call.1} parent=1 // pred_check_branch
      %14 = sbr.rel (0) target = $region5
    $region4: #{tpu_custom_call.1} parent=1 // pred_region
      %s16 = ssub.s32 128, 128
      %17 = vsyncadd [#allocation3], %s16
      %s19 = sshll.u32 [#allocation2], 4
      %s20 = int_to_ptr.vmem [resolvable:$true] %s19
      %22 = dma.hbm_to_vmem [thread:$0]  %s0, 128, %s20, [#allocation3]
    $region5: #{tpu_custom_call.1} parent=1 // pred_fallthru
      _
    // Predicated region
    $region6: #{tpu_custom_call.1} parent=1 // pred_check
      _
    $region7: #{tpu_custom_call.1} parent=1 // pred_check_branch
      %24 = sbr.rel (0) target = $region9
    $region8: #{tpu_custom_call.1} parent=1 // pred_region
      %s26 = ssub.s32 256, 256
      %27 = vsyncadd [#allocation6], %s26
      %s28 = sshll.u32 [#allocation5], 4
      %s29 = int_to_ptr.vmem [resolvable:$true] %s28
      %34 = dma.hbm_to_vmem [thread:$0]  %s1, 256, %s29, [#allocation6], 128, 128, 8
    $region9: #{tpu_custom_call.1} parent=1 // pred_fallthru
      _
    // Predicated region
    $region10: #{tpu_custom_call.1} parent=1 // pred_check
      _
    $region11: #{tpu_custom_call.1} parent=1 // pred_check_branch
      %36 = sbr.rel (0) target = $region13
    $region12: #{tpu_custom_call.1} parent=1 // pred_region
      _
    $region13: #{tpu_custom_call.1} parent=1 // pred_fallthru
      _
    // Predicated region
    $region14: #{tpu_custom_call.1} parent=1 // pred_check
      _
    $region15: #{tpu_custom_call.1} parent=1 // pred_check_branch
      %38 = sbr.rel (0) target = $region17
    $region16: #{tpu_custom_call.1} parent=1 // pred_region
      %s40 = ssub.s32 512, 512
      %41 = vsyncadd [#allocation6], %s40
      %s42 = sshll.u32 [#allocation7], 4
      %s43 = int_to_ptr.vmem [resolvable:$true] %s42
      %48 = dma.hbm_to_vmem [thread:$0]  %s3, 512, %s43, [#allocation6], 128, 128, 8
    $region17: #{tpu_custom_call.1} parent=1 // pred_fallthru
      _
    // Predicated region
    $region18: #{tpu_custom_call.1} parent=1 // pred_check
      _
    $region19: #{tpu_custom_call.1} parent=1 // pred_check_branch
      %50 = sbr.rel (0) target = $region21
    $region20: #{tpu_custom_call.1} parent=1 // pred_region
      _
    $region21: #{tpu_custom_call.1} parent=1 // pred_fallthru
      _
    // Predicated region
    $region22: #{tpu_custom_call.1} parent=1 // pred_check
      _
    $region23: #{tpu_custom_call.1} parent=1 // pred_check_branch
      %52 = sbr.rel (0) target = $region25
    $region24: #{tpu_custom_call.1} parent=1 // pred_region
      %53 = dma.done [#allocation3], 128
    $region25: #{tpu_custom_call.1} parent=1 // pred_fallthru
      _
    // Predicated region
    $region26: #{tpu_custom_call.1} parent=1 // pred_check
      _
    $region27: #{tpu_custom_call.1} parent=1 // pred_check_branch
      %55 = sbr.rel (0) target = $region29
    $region28: #{tpu_custom_call.1} parent=1 // pred_region
      %56 = dma.done [#allocation6], 256
    $region29: #{tpu_custom_call.1} parent=1 // pred_fallthru
      _
    // Predicated region
    $region30: #{tpu_custom_call.1} parent=1 // pred_check
      _
    $region31: #{tpu_custom_call.1} parent=1 // pred_check_branch
      %58 = sbr.rel (0) target = $region33
    $region32: #{tpu_custom_call.1} parent=1 // pred_region
      %59 = dma.done [#allocation6], 512
    $region33: #{tpu_custom_call.1} parent=1 // pred_fallthru
      _
    %v60 = vld [vmem:[#allocation2] sm:$0xff]
    %v61 = vld [vmem:[#allocation5] sm:$0xff]
    %v62 = vld [vmem:[#allocation5 + $0x8] sm:$0xff]
    %v63 = vld [vmem:[%s2] sm:$0x1]
    %v65 = vlaneseq
    %v66 = vshrl.u32 %v65, 7
    %v67 = vsub.s32 0, %v66
    %v68 = vrot.slane %v63, %v67
    %vm70 = vcmask 130048
    %v72 = vsel %vm70, %v60, 0
    %74 = vmatprep.subr.mxu0 0.0
    %75 = vmatpush1.msra.mxu0 %v61
    %76 = vmatprep.subr.mxu0 0.0
    %77 = vmatpush1.msra.mxu0 %v62
    %78 = vmatprep.subr.mxu0 0.0
    %79 = vmatpush1.msra.mxu0 0.0
    %80 = vmatprep.subr.mxu0 0.0
    %81 = vmatpush1.msra.mxu0 0.0
    %82 = vmatprep.subr.mxu0 0.0
    %83 = vmatpush1.msra.mxu0 0.0
    %84 = vmatprep.subr.mxu0 0.0
    %85 = vmatpush1.msra.mxu0 0.0
    %86 = vmatprep.subr.mxu0 0.0
    %87 = vmatpush1.msra.mxu0 0.0
    %88 = vmatprep.subr.mxu0 0.0
    %89 = vmatpush1.msra.mxu0 0.0
    %90 = vmatprep.subr.mxu0 0.0
    %91 = vmatpush1.msra.mxu0 0.0
    %92 = vmatprep.subr.mxu0 0.0
    %93 = vmatpush1.msra.mxu0 0.0
    %94 = vmatprep.subr.mxu0 0.0
    %95 = vmatpush1.msra.mxu0 0.0
    %96 = vmatprep.subr.mxu0 0.0
    %97 = vmatpush1.msra.mxu0 0.0
    %98 = vmatprep.subr.mxu0 0.0
    %99 = vmatpush1.msra.mxu0 0.0
    %100 = vmatprep.subr.mxu0 0.0
    %101 = vmatpush1.msra.mxu0 0.0
    %102 = vmatprep.subr.mxu0 0.0
    %103 = vmatpush1.msra.mxu0 0.0
    %104 = vmatprep.subr.mxu0 0.0
    %105 = vmatpush1.msra.mxu0 0.0
    %106 = vmatprep.subr.mxu0 0.0
    %107 = vmatpush1.msra.mxu0 0.0
    %108 = vmatprep.subr.mxu0 0.0
    %109 = vmatpush1.msra.mxu0 0.0
    %110 = vmatprep.subr.mxu0 0.0
    %111 = vmatpush1.msra.mxu0 0.0
    %112 = vmatprep.subr.mxu0 0.0
    %113 = vmatpush1.msra.mxu0 0.0
    %114 = vmatprep.subr.mxu0 0.0
    %115 = vmatpush1.msra.mxu0 0.0
    %116 = vmatprep.subr.mxu0 0.0
    %117 = vmatpush1.msra.mxu0 0.0
    %118 = vmatprep.subr.mxu0 0.0
    %119 = vmatpush1.msra.mxu0 0.0
    %120 = vmatprep.subr.mxu0 0.0
    %121 = vmatpush1.msra.mxu0 0.0
    %122 = vmatprep.subr.mxu0 0.0
    %123 = vmatpush1.msra.mxu0 0.0
    %124 = vmatprep.subr.mxu0 0.0
    %125 = vmatpush1.msra.mxu0 0.0
    %126 = vmatprep.subr.mxu0 0.0
    %127 = vmatpush1.msra.mxu0 0.0
    %128 = vmatprep.subr.mxu0 0.0
    %129 = vmatpush1.msra.mxu0 0.0
    %130 = vmatprep.subr.mxu0 0.0
    %131 = vmatpush1.msra.mxu0 0.0
    %132 = vmatprep.subr.mxu0 0.0
    %133 = vmatpush1.msra.mxu0 0.0
    %134 = vmatprep.subr.mxu0 0.0
    %135 = vmatpush1.msra.mxu0 0.0
    %136 = vmatprep.subr.mxu0 0.0
    %137 = vmatpush1.msra.mxu0 0.0
    %138 = vmatprep.mubr.f32.mxu0 0.0
    %139 = vmatmul.mubr.f32.gmra.mrb[0].mxu0 %v72
    %v140 = vpop.f32.mrb[0].mxu0
    %v141 = vadd.f32 %v68, %v140
    %v142 = vpop.f32.mrb[0].mxu0
    %143 = vdwg.mxu0
    %v144 = vmax.f32 %v141, 0.0
    %v145 = vld [vmem:[#allocation7] sm:$0xff]
    %v146 = vld [vmem:[#allocation7 + $0x8] sm:$0xff]
    %v147 = vld [vmem:[#allocation7 + $0x10] sm:$0xff]
    %v148 = vld [vmem:[#allocation7 + $0x18] sm:$0xff]
    %v149 = vld [vmem:[%s4] sm:$0x1]
    %v151 = vlaneseq
    %v152 = vshrl.u32 %v151, 7
    %v153 = vsub.s32 0, %v152
    %v154 = vrot.slane %v149, %v153
    %vm156 = vcmask 261120
    %v158 = vsel %vm156, %v144, 0
    %160 = vmatprep.subr.mxu0 0.0
    %161 = vmatpush1.msra.mxu0 %v145
    %162 = vmatprep.subr.mxu0 0.0
    %163 = vmatpush1.msra.mxu0 %v146
    %164 = vmatprep.subr.mxu0 0.0
    %165 = vmatpush1.msra.mxu0 %v147
    %166 = vmatprep.subr.mxu0 0.0
    %167 = vmatpush1.msra.mxu0 %v148
    %168 = vmatprep.subr.mxu0 0.0
    %169 = vmatpush1.msra.mxu0 0.0
    %170 = vmatprep.subr.mxu0 0.0
    %171 = vmatpush1.msra.mxu0 0.0
    %172 = vmatprep.subr.mxu0 0.0
    %173 = vmatpush1.msra.mxu0 0.0
    %174 = vmatprep.subr.mxu0 0.0
    %175 = vmatpush1.msra.mxu0 0.0
    %176 = vmatprep.subr.mxu0 0.0
    %177 = vmatpush1.msra.mxu0 0.0
    %178 = vmatprep.subr.mxu0 0.0
    %179 = vmatpush1.msra.mxu0 0.0
    %180 = vmatprep.subr.mxu0 0.0
    %181 = vmatpush1.msra.mxu0 0.0
    %182 = vmatprep.subr.mxu0 0.0
    %183 = vmatpush1.msra.mxu0 0.0
    %184 = vmatprep.subr.mxu0 0.0
    %185 = vmatpush1.msra.mxu0 0.0
    %186 = vmatprep.subr.mxu0 0.0
    %187 = vmatpush1.msra.mxu0 0.0
    %188 = vmatprep.subr.mxu0 0.0
    %189 = vmatpush1.msra.mxu0 0.0
    %190 = vmatprep.subr.mxu0 0.0
    %191 = vmatpush1.msra.mxu0 0.0
    %192 = vmatprep.subr.mxu0 0.0
    %193 = vmatpush1.msra.mxu0 0.0
    %194 = vmatprep.subr.mxu0 0.0
    %195 = vmatpush1.msra.mxu0 0.0
    %196 = vmatprep.subr.mxu0 0.0
    %197 = vmatpush1.msra.mxu0 0.0
    %198 = vmatprep.subr.mxu0 0.0
    %199 = vmatpush1.msra.mxu0 0.0
    %200 = vmatprep.subr.mxu0 0.0
    %201 = vmatpush1.msra.mxu0 0.0
    %202 = vmatprep.subr.mxu0 0.0
    %203 = vmatpush1.msra.mxu0 0.0
    %204 = vmatprep.subr.mxu0 0.0
    %205 = vmatpush1.msra.mxu0 0.0
    %206 = vmatprep.subr.mxu0 0.0
    %207 = vmatpush1.msra.mxu0 0.0
    %208 = vmatprep.subr.mxu0 0.0
    %209 = vmatpush1.msra.mxu0 0.0
    %210 = vmatprep.subr.mxu0 0.0
    %211 = vmatpush1.msra.mxu0 0.0
    %212 = vmatprep.subr.mxu0 0.0
    %213 = vmatpush1.msra.mxu0 0.0
    %214 = vmatprep.subr.mxu0 0.0
    %215 = vmatpush1.msra.mxu0 0.0
    %216 = vmatprep.subr.mxu0 0.0
    %217 = vmatpush1.msra.mxu0 0.0
    %218 = vmatprep.subr.mxu0 0.0
    %219 = vmatpush1.msra.mxu0 0.0
    %220 = vmatprep.subr.mxu0 0.0
    %221 = vmatpush1.msra.mxu0 0.0
    %222 = vmatprep.subr.mxu0 0.0
    %223 = vmatpush1.msra.mxu0 0.0
    %224 = vmatprep.mubr.f32.mxu0 0.0
    %225 = vmatmul.mubr.f32.gmra.mrb[0].mxu0 %v158
    %v226 = vpop.f32.mrb[0].mxu0
    %v227 = vadd.f32 %v154, %v226
    %v228 = vpop.f32.mrb[0].mxu0
    %229 = vdwg.mxu0
    %230 = vst [vmem:[#allocation8] sm:$0xff] %v227
    // Predicated region
    $region34: #{tpu_custom_call.1} parent=1 // pred_check
      _
    $region35: #{tpu_custom_call.1} parent=1 // pred_check_branch
      %232 = sbr.rel (0) target = $region37
    $region36: #{tpu_custom_call.1} parent=1 // pred_region
      %s234 = ssub.s32 128, 128
      %235 = vsyncadd [#allocation4], %s234
      %s237 = sshll.u32 [#allocation8], 4
      %s238 = int_to_ptr.vmem [resolvable:$true] %s237
      %240 = dma.vmem_to_hbm [thread:$0]  %s238, 128, %s5, [#allocation4]
    $region37: #{tpu_custom_call.1} parent=1 // pred_fallthru
      _
    // Predicated region
    $region38: #{tpu_custom_call.1} parent=1 // pred_check
      _
    $region39: #{tpu_custom_call.1} parent=1 // pred_check_branch
      %242 = sbr.rel (0) target = $region41
    $region40: #{tpu_custom_call.1} parent=1 // pred_region
      %243 = dma.done [#allocation4], 128
    $region41: #{tpu_custom_call.1} parent=1 // pred_fallthru
      _
    %244 = vsyncpa [#allocation3], 1
    %245 = vsyncpa [#allocation6], 1
    %246 = vsyncpa [#allocation4], 1

// kernel: tpu_custom_call.1
$region0: #{tpu_custom_call.1}
  #allocation0 [shape = 'u32[]', space=smem, size = 0x4, offset = 0x4, fixed_abs, tag = 'smem constant byte address 0x4 - core index']
  #allocation1 [shape = 'u32[144,128]{1,0:T(1,128)}', space=vmem, size = 0x12000, scoped, tag = 'internal scratch']
  %s0 = inlined_call_operand.hbm [shape: f32[8,16], index: 0, kind: input, shape index: {}]
  %s1 = inlined_call_operand.hbm [shape: f32[16,32], index: 1, kind: input, shape index: {}]
  %s2 = inlined_call_operand.vmem [shape: f32[1,32], index: 2, kind: input, shape index: {}]
  %s3 = inlined_call_operand.hbm [shape: f32[32,128], index: 3, kind: input, shape index: {}]
  %s4 = inlined_call_operand.vmem [shape: f32[1,128], index: 4, kind: input, shape index: {}]
  %s5 = inlined_call_operand.hbm [shape: f32[8,128], index: 5, kind: output, shape index: {}]
  %s6 = sld [smem:[#allocation0]]
  $region42: #{tpu_custom_call.1} parent=0
    _
  %s8 = ssub.s32 1, %s6
  %s9 = scalar_select 0, %s8, %s6
  $region1: #{tpu_custom_call.1} parent=0
    #allocation2 [shape = 'u8[4096]{0}', space=vmem, size = 0x1000, scoped, tag = 'input window, operand 0, single buffered']
    #allocation3 [shape = 's32[1]{0}', space=sflag, size = 0x4, scoped, tag = 'scoped memory for tpu_custom_call.1']
    #allocation4 [shape = 's32[1]{0}', space=sflag, size = 0x4, scoped, tag = 'scoped memory for tpu_custom_call.1']
    #allocation5 [shape = 'u8[8192]{0}', space=vmem, size = 0x2000, scoped, tag = 'input window, operand 1, single buffered']
    #allocation6 [shape = 's32[1]{0}', space=sflag, size = 0x4, scoped, tag = 'scoped memory for tpu_custom_call.1']
    #allocation7 [shape = 'u8[16384]{0}', space=vmem, size = 0x4000, scoped, tag = 'input window, operand 3, single buffered']
    #allocation8 [shape = 'u8[4096]{0}', space=vmem, size = 0x1000, scoped, tag = 'output window, operand 0, single buffered']
    %10 = vsyncpa [#allocation3], 0
    %11 = vsyncpa [#allocation6], 0
    %12 = vsyncpa [#allocation4], 0
    // Predicated region
    $region2: #{tpu_custom_call.1} parent=1 // pred_check
      _
    $region3: #{tpu_custom_call.1} parent=1 // pred_check_branch
      %14 = sbr.rel (0) target = $region5
    $region4: #{tpu_custom_call.1} parent=1 // pred_region
      %s16 = ssub.s32 128, 128
      %17 = vsyncadd [#allocation3], %s16
      %s19 = sshll.u32 [#allocation2], 4
      %s20 = int_to_ptr.vmem [resolvable:$true] %s19
      %22 = dma.hbm_to_vmem [thread:$0]  %s0, 128, %s20, [#allocation3]
    $region5: #{tpu_custom_call.1} parent=1 // pred_fallthru
      _
    // Predicated region
    $region6: #{tpu_custom_call.1} parent=1 // pred_check
      _
    $region7: #{tpu_custom_call.1} parent=1 // pred_check_branch
      %24 = sbr.rel (0) target = $region9
    $region8: #{tpu_custom_call.1} parent=1 // pred_region
      %s26 = ssub.s32 256, 256
      %27 = vsyncadd [#allocation6], %s26
      %s28 = sshll.u32 [#allocation5], 4
      %s29 = int_to_ptr.vmem [resolvable:$true] %s28
      %34 = dma.hbm_to_vmem [thread:$0]  %s1, 256, %s29, [#allocation6], 128, 128, 8
    $region9: #{tpu_custom_call.1} parent=1 // pred_fallthru
      _
    // Predicated region
    $region10: #{tpu_custom_call.1} parent=1 // pred_check
      _
    $region11: #{tpu_custom_call.1} parent=1 // pred_check_branch
      %36 = sbr.rel (0) target = $region13
    $region12: #{tpu_custom_call.1} parent=1 // pred_region
      _
    $region13: #{tpu_custom_call.1} parent=1 // pred_fallthru
      _
    // Predicated region
    $region14: #{tpu_custom_call.1} parent=1 // pred_check
      _
    $region15: #{tpu_custom_call.1} parent=1 // pred_check_branch
      %38 = sbr.rel (0) target = $region17
    $region16: #{tpu_custom_call.1} parent=1 // pred_region
      %s40 = ssub.s32 512, 512
      %41 = vsyncadd [#allocation6], %s40
      %s42 = sshll.u32 [#allocation7], 4
      %s43 = int_to_ptr.vmem [resolvable:$true] %s42
      %48 = dma.hbm_to_vmem [thread:$0]  %s3, 512, %s43, [#allocation6], 128, 128, 8
    $region17: #{tpu_custom_call.1} parent=1 // pred_fallthru
      _
    // Predicated region
    $region18: #{tpu_custom_call.1} parent=1 // pred_check
      _
    $region19: #{tpu_custom_call.1} parent=1 // pred_check_branch
      %50 = sbr.rel (0) target = $region21
    $region20: #{tpu_custom_call.1} parent=1 // pred_region
      _
    $region21: #{tpu_custom_call.1} parent=1 // pred_fallthru
      _
    // Predicated region
    $region22: #{tpu_custom_call.1} parent=1 // pred_check
      _
    $region23: #{tpu_custom_call.1} parent=1 // pred_check_branch
      %52 = sbr.rel (0) target = $region25
    $region24: #{tpu_custom_call.1} parent=1 // pred_region
      %53 = dma.done [#allocation3], 128
    $region25: #{tpu_custom_call.1} parent=1 // pred_fallthru
      _
    // Predicated region
    $region26: #{tpu_custom_call.1} parent=1 // pred_check
      _
    $region27: #{tpu_custom_call.1} parent=1 // pred_check_branch
      %55 = sbr.rel (0) target = $region29
    $region28: #{tpu_custom_call.1} parent=1 // pred_region
      %56 = dma.done [#allocation6], 256
    $region29: #{tpu_custom_call.1} parent=1 // pred_fallthru
      _
    // Predicated region
    $region30: #{tpu_custom_call.1} parent=1 // pred_check
      _
    $region31: #{tpu_custom_call.1} parent=1 // pred_check_branch
      %58 = sbr.rel (0) target = $region33
    $region32: #{tpu_custom_call.1} parent=1 // pred_region
      %59 = dma.done [#allocation6], 512
    $region33: #{tpu_custom_call.1} parent=1 // pred_fallthru
      _
    %v60 = vld [vmem:[#allocation2] sm:$0xff]
    %v61 = vld [vmem:[#allocation5] sm:$0xff]
    %v62 = vld [vmem:[#allocation5 + $0x8] sm:$0xff]
    %v63 = vld [vmem:[%s2] sm:$0x1]
    %v65 = vlaneseq
    %v66 = vshrl.u32 %v65, 7
    %v67 = vsub.s32 0, %v66
    %v68 = vrot.slane %v63, %v67
    %vm70 = vcmask 130048
    %v72 = vsel %vm70, %v60, 0
    %74 = vmatprep.subr.mxu0 0.0
    %75 = vmatpush1.msra.mxu0 %v61
    %76 = vmatprep.subr.mxu0 0.0
    %77 = vmatpush1.msra.mxu0 %v62
    %78 = vmatprep.subr.mxu0 0.0
    %79 = vmatpush1.msra.mxu0 0.0
    %80 = vmatprep.subr.mxu0 0.0
    %81 = vmatpush1.msra.mxu0 0.0
    %82 = vmatprep.subr.mxu0 0.0
    %83 = vmatpush1.msra.mxu0 0.0
    %84 = vmatprep.subr.mxu0 0.0
    %85 = vmatpush1.msra.mxu0 0.0
    %86 = vmatprep.subr.mxu0 0.0
    %87 = vmatpush1.msra.mxu0 0.0
    %88 = vmatprep.subr.mxu0 0.0
    %89 = vmatpush1.msra.mxu0 0.0
    %90 = vmatprep.subr.mxu0 0.0
    %91 = vmatpush1.msra.mxu0 0.0
    %92 = vmatprep.subr.mxu0 0.0
    %93 = vmatpush1.msra.mxu0 0.0
    %94 = vmatprep.subr.mxu0 0.0
    %95 = vmatpush1.msra.mxu0 0.0
    %96 = vmatprep.subr.mxu0 0.0
    %97 = vmatpush1.msra.mxu0 0.0
    %98 = vmatprep.subr.mxu0 0.0
    %99 = vmatpush1.msra.mxu0 0.0
    %100 = vmatprep.subr.mxu0 0.0
    %101 = vmatpush1.msra.mxu0 0.0
    %102 = vmatprep.subr.mxu0 0.0
    %103 = vmatpush1.msra.mxu0 0.0
    %104 = vmatprep.subr.mxu0 0.0
    %105 = vmatpush1.msra.mxu0 0.0
    %106 = vmatprep.subr.mxu0 0.0
    %107 = vmatpush1.msra.mxu0 0.0
    %108 = vmatprep.subr.mxu0 0.0
    %109 = vmatpush1.msra.mxu0 0.0
    %110 = vmatprep.subr.mxu0 0.0
    %111 = vmatpush1.msra.mxu0 0.0
    %112 = vmatprep.subr.mxu0 0.0
    %113 = vmatpush1.msra.mxu0 0.0
    %114 = vmatprep.subr.mxu0 0.0
    %115 = vmatpush1.msra.mxu0 0.0
    %116 = vmatprep.subr.mxu0 0.0
    %117 = vmatpush1.msra.mxu0 0.0
    %118 = vmatprep.subr.mxu0 0.0
    %119 = vmatpush1.msra.mxu0 0.0
    %120 = vmatprep.subr.mxu0 0.0
    %121 = vmatpush1.msra.mxu0 0.0
    %122 = vmatprep.subr.mxu0 0.0
    %123 = vmatpush1.msra.mxu0 0.0
    %124 = vmatprep.subr.mxu0 0.0
    %125 = vmatpush1.msra.mxu0 0.0
    %126 = vmatprep.subr.mxu0 0.0
    %127 = vmatpush1.msra.mxu0 0.0
    %128 = vmatprep.subr.mxu0 0.0
    %129 = vmatpush1.msra.mxu0 0.0
    %130 = vmatprep.subr.mxu0 0.0
    %131 = vmatpush1.msra.mxu0 0.0
    %132 = vmatprep.subr.mxu0 0.0
    %133 = vmatpush1.msra.mxu0 0.0
    %134 = vmatprep.subr.mxu0 0.0
    %135 = vmatpush1.msra.mxu0 0.0
    %136 = vmatprep.subr.mxu0 0.0
    %137 = vmatpush1.msra.mxu0 0.0
    %138 = vmatprep.mubr.f32.mxu0 0.0
    %139 = vmatmul.mubr.f32.gmra.mrb[0].mxu0 %v72
    %v140 = vpop.f32.mrb[0].mxu0
    %v141 = vadd.f32 %v68, %v140
    %v142 = vpop.f32.mrb[0].mxu0
    %143 = vdwg.mxu0
    %v144 = vmax.f32 %v141, 0.0
    %v145 = vld [vmem:[#allocation7] sm:$0xff]
    %v146 = vld [vmem:[#allocation7 + $0x8] sm:$0xff]
    %v147 = vld [vmem:[#allocation7 + $0x10] sm:$0xff]
    %v148 = vld [vmem:[#allocation7 + $0x18] sm:$0xff]
    %v149 = vld [vmem:[%s4] sm:$0x1]
    %v151 = vlaneseq
    %v152 = vshrl.u32 %v151, 7
    %v153 = vsub.s32 0, %v152
    %v154 = vrot.slane %v149, %v153
    %vm156 = vcmask 261120
    %v158 = vsel %vm156, %v144, 0
    %160 = vmatprep.subr.mxu0 0.0
    %161 = vmatpush1.msra.mxu0 %v145
    %162 = vmatprep.subr.mxu0 0.0
    %163 = vmatpush1.msra.mxu0 %v146
    %164 = vmatprep.subr.mxu0 0.0
    %165 = vmatpush1.msra.mxu0 %v147
    %166 = vmatprep.subr.mxu0 0.0
    %167 = vmatpush1.msra.mxu0 %v148
    %168 = vmatprep.subr.mxu0 0.0
    %169 = vmatpush1.msra.mxu0 0.0
    %170 = vmatprep.subr.mxu0 0.0
    %171 = vmatpush1.msra.mxu0 0.0
    %172 = vmatprep.subr.mxu0 0.0
    %173 = vmatpush1.msra.mxu0 0.0
    %174 = vmatprep.subr.mxu0 0.0
    %175 = vmatpush1.msra.mxu0 0.0
    %176 = vmatprep.subr.mxu0 0.0
    %177 = vmatpush1.msra.mxu0 0.0
    %178 = vmatprep.subr.mxu0 0.0
    %179 = vmatpush1.msra.mxu0 0.0
    %180 = vmatprep.subr.mxu0 0.0
    %181 = vmatpush1.msra.mxu0 0.0
    %182 = vmatprep.subr.mxu0 0.0
    %183 = vmatpush1.msra.mxu0 0.0
    %184 = vmatprep.subr.mxu0 0.0
    %185 = vmatpush1.msra.mxu0 0.0
    %186 = vmatprep.subr.mxu0 0.0
    %187 = vmatpush1.msra.mxu0 0.0
    %188 = vmatprep.subr.mxu0 0.0
    %189 = vmatpush1.msra.mxu0 0.0
    %190 = vmatprep.subr.mxu0 0.0
    %191 = vmatpush1.msra.mxu0 0.0
    %192 = vmatprep.subr.mxu0 0.0
    %193 = vmatpush1.msra.mxu0 0.0
    %194 = vmatprep.subr.mxu0 0.0
    %195 = vmatpush1.msra.mxu0 0.0
    %196 = vmatprep.subr.mxu0 0.0
    %197 = vmatpush1.msra.mxu0 0.0
    %198 = vmatprep.subr.mxu0 0.0
    %199 = vmatpush1.msra.mxu0 0.0
    %200 = vmatprep.subr.mxu0 0.0
    %201 = vmatpush1.msra.mxu0 0.0
    %202 = vmatprep.subr.mxu0 0.0
    %203 = vmatpush1.msra.mxu0 0.0
    %204 = vmatprep.subr.mxu0 0.0
    %205 = vmatpush1.msra.mxu0 0.0
    %206 = vmatprep.subr.mxu0 0.0
    %207 = vmatpush1.msra.mxu0 0.0
    %208 = vmatprep.subr.mxu0 0.0
    %209 = vmatpush1.msra.mxu0 0.0
    %210 = vmatprep.subr.mxu0 0.0
    %211 = vmatpush1.msra.mxu0 0.0
    %212 = vmatprep.subr.mxu0 0.0
    %213 = vmatpush1.msra.mxu0 0.0
    %214 = vmatprep.subr.mxu0 0.0
    %215 = vmatpush1.msra.mxu0 0.0
    %216 = vmatprep.subr.mxu0 0.0
    %217 = vmatpush1.msra.mxu0 0.0
    %218 = vmatprep.subr.mxu0 0.0
    %219 = vmatpush1.msra.mxu0 0.0
    %220 = vmatprep.subr.mxu0 0.0
    %221 = vmatpush1.msra.mxu0 0.0
    %222 = vmatprep.subr.mxu0 0.0
    %223 = vmatpush1.msra.mxu0 0.0
    %224 = vmatprep.mubr.f32.mxu0 0.0
    %225 = vmatmul.mubr.f32.gmra.mrb[0].mxu0 %v158
    %v226 = vpop.f32.mrb[0].mxu0
    %v227 = vadd.f32 %v154, %v226
    %v228 = vpop.f32.mrb[0].mxu0
    %229 = vdwg.mxu0
    %230 = vst [vmem:[#allocation8] sm:$0xff] %v227
    // Predicated region
    $region34: #{tpu_custom_call.1} parent=1 // pred_check
      _
    $region35: #{tpu_custom_call.1} parent=1 // pred_check_branch
      %232 = sbr.rel (0) target = $region37
    $region36: #{tpu_custom_call.1} parent=1 // pred_region
      %s234 = ssub.s32 128, 128
      %235 = vsyncadd [#allocation4], %s234
      %s237 = sshll.u32 [#allocation8], 4
      %s238 = int_to_ptr.vmem [resolvable:$true] %s237
      %240 = dma.vmem_to_hbm [thread:$0]  %s238, 128, %s5, [#allocation4]
    $region37: #{tpu_custom_call.1} parent=1 // pred_fallthru
      _
    // Predicated region
    $region38: #{tpu_custom_call.1} parent=1 // pred_check
      _
    $region39: #{tpu_custom_call.1} parent=1 // pred_check_branch
      %242 = sbr.rel (0) target = $region41
    $region40: #{tpu_custom_call.1} parent=1 // pred_region
      %243 = dma.done [#allocation4], 128
    $region41: #{tpu_custom_call.1} parent=1 // pred_fallthru
      _
    %244 = vsyncpa [#allocation3], 1
    %245 = vsyncpa [#allocation6], 1
    %246 = vsyncpa [#allocation4], 1

</llo_original>
